<compile_context>
chip_gen: v6e
topology: v6e:2x2x1
jax: 0.10.0
libtpu: 0.0.40
codegen_flags: <defaults>
</compile_context>

<pallas_src>
import jax
import jax.numpy as jnp
from jax.experimental import pallas as pl
from jax.experimental.pallas import tpu as pltpu


def _round_up(x, m):
    return (x + m - 1) // m * m


_VMEM_LIMIT = 32 * 1024 * 1024  # safe on v5e/v6e/v7x; tiles below are far smaller


def feature_fusion_forward(fsp_nchw, fcp_nchw, params, *, block_s=512):
    """fsp/fcp in PyTorch NCHW. Returns NCHW output (f32)."""
    w1a, w1b, gamma, beta, wc1, wc2 = params
    N, C1, H, W = fsp_nchw.shape
    C2 = fcp_nchw.shape[1]
    Cout = w1a.shape[0]
    mid = wc1.shape[0]
    S = H * W
    eps = 1e-5
    f32 = jnp.float32

    # ---- padded sizes: channels -> multiples of 8 (sublane), spatial -> lane-dense tiles
    Cp = _round_up(Cout, 8)
    Mp = _round_up(mid, 8)
    C1p = _round_up(C1, 8)
    C2p = _round_up(C2, 8)
    TS = min(block_s, _round_up(S, 128))     # spatial tile, multiple of 128
    S_pad = _round_up(S, TS)
    n_s = S_pad // TS

    # NCHW -> (N, C, S): pure reshape, spatial stays on the (fast) lane axis.
    x1 = fsp_nchw.reshape(N, C1, S).astype(f32)
    x2 = fcp_nchw.reshape(N, C2, S).astype(f32)
    if (C1p != C1) or (S_pad != S):
        x1 = jnp.pad(x1, ((0, 0), (0, C1p - C1), (0, S_pad - S)))
    if (C2p != C2) or (S_pad != S):
        x2 = jnp.pad(x2, ((0, 0), (0, C2p - C2), (0, S_pad - S)))

    def padw(w, rows, cols):
        w = w.astype(f32)
        return jnp.pad(w, ((0, rows - w.shape[0]), (0, cols - w.shape[1])))

    w1a_k = padw(w1a, Cp, C1p)          # (Cp, C1p)  conv weight, fsp half
    w1b_k = padw(w1b, Cp, C2p)          # (Cp, C2p)  conv weight, fcp half
    wc1_k = padw(wc1, Mp, Cp)           # (Mp, Cp)   attention conv1
    wc2_k = padw(wc2, Cp, Mp)           # (Cp, Mp)   attention conv2
    gamma_p = jnp.pad(gamma.astype(f32), (0, Cp - Cout))   # padded channels -> 0
    beta_p = jnp.pad(beta.astype(f32), (0, Cp - Cout))

    # ---- shared BlockSpecs -------------------------------------------------------
    x_spec1 = pl.BlockSpec((None, C1p, TS), lambda n, s: (n, 0, s))
    x_spec2 = pl.BlockSpec((None, C2p, TS), lambda n, s: (n, 0, s))
    w1a_spec = pl.BlockSpec((Cp, C1p), lambda n, s: (0, 0))
    w1b_spec = pl.BlockSpec((Cp, C2p), lambda n, s: (0, 0))
    cvec_spec = pl.BlockSpec((Cp, 1), lambda n, s: (0, 0))
    feat_spec = pl.BlockSpec((None, Cp, TS), lambda n, s: (n, 0, s))
    pooled_spec = pl.BlockSpec((None, Cp, 1), lambda n, s: (n, 0, 0))

    # ================= pass 1: per-channel sum / sum-of-squares of `pre` ==========
    def stats_kernel(x1_ref, x2_ref, w1a_ref, w1b_ref, stats_ref):
        @pl.when((pl.program_id(0) == 0) & (pl.program_id(1) == 0))
        def _():
            stats_ref[...] = jnp.zeros_like(stats_ref)

        pre = (jnp.dot(w1a_ref[...], x1_ref[...], preferred_element_type=jnp.float32)
               + jnp.dot(w1b_ref[...], x2_ref[...], preferred_element_type=jnp.float32))
        psum = jnp.sum(pre, axis=-1, keepdims=True)
        psq = jnp.sum(pre * pre, axis=-1, keepdims=True)
        stats_ref[...] += jnp.concatenate([psum, psq], axis=-1)

    stats = pl.pallas_call(
        stats_kernel,
        out_shape=jax.ShapeDtypeStruct((Cp, 2), jnp.float32),
        grid=(N, n_s),
        in_specs=[x_spec1, x_spec2, w1a_spec, w1b_spec],
        out_specs=pl.BlockSpec((Cp, 2), lambda n, s: (0, 0)),
        compiler_params=pltpu.CompilerParams(
            dimension_semantics=("arbitrary", "arbitrary"),
            vmem_limit_bytes=_VMEM_LIMIT),
    )(x1, x2, w1a_k, w1b_k)

    # Fold BatchNorm (training-mode biased batch stats) into per-channel scale/shift.
    cnt = float(N * S)   # padded spatial / channel positions contribute exact zeros
    mean = stats[:, 0] / cnt
    var = jnp.maximum(stats[:, 1] / cnt - mean * mean, 0.0)
    inv_std = jax.lax.rsqrt(var + eps)
    bn_scale = (gamma_p * inv_std).reshape(Cp, 1)
    bn_shift = (beta_p - mean * gamma_p * inv_std).reshape(Cp, 1)

    # ================= pass 2: feat = ReLU(BN(conv1x1)), per-sample avg-pool ======
    inv_s = 1.0 / float(S)

    def norm_kernel(x1_ref, x2_ref, w1a_ref, w1b_ref, sc_ref, sh_ref,
                    feat_ref, pooled_ref):
        s = pl.program_id(1)
        pre = (jnp.dot(w1a_ref[...], x1_ref[...], preferred_element_type=jnp.float32)
               + jnp.dot(w1b_ref[...], x2_ref[...], preferred_element_type=jnp.float32))
        feat = jnp.maximum(pre * sc_ref[...] + sh_ref[...], 0.0)        # (Cp, TS)
        feat_ref[...] = feat.astype(feat_ref.dtype)

        if S_pad != S:  # mask padded spatial columns out of the pooled mean
            col = jax.lax.broadcasted_iota(jnp.int32, feat.shape, 1) + s * TS
            feat = jnp.where(col < S, feat, 0.0)

        @pl.when(s == 0)
        def _():
            pooled_ref[...] = jnp.zeros_like(pooled_ref)

        pooled_ref[...] += jnp.sum(feat, axis=-1, keepdims=True)

        @pl.when(s == pl.num_programs(1) - 1)
        def _():
            pooled_ref[...] = pooled_ref[...] * inv_s

    feat, pooled = pl.pallas_call(
        norm_kernel,
        out_shape=(jax.ShapeDtypeStruct((N, Cp, S_pad), jnp.float32),
                   jax.ShapeDtypeStruct((N, Cp, 1), jnp.float32)),
        grid=(N, n_s),
        in_specs=[x_spec1, x_spec2, w1a_spec, w1b_spec, cvec_spec, cvec_spec],
        out_specs=(feat_spec, pooled_spec),
        compiler_params=pltpu.CompilerParams(
            dimension_semantics=("parallel", "arbitrary"),
            vmem_limit_bytes=_VMEM_LIMIT),
    )(x1, x2, w1a_k, w1b_k, bn_scale, bn_shift)

    # ================= pass 3: attention MLP + out = feat * (1 + atten) ===========
    def scale_kernel(feat_ref, pooled_ref, wc1_ref, wc2_ref, out_ref):
        p = pooled_ref[...]                                             # (Cp, 1)
        a1 = jnp.maximum(
            jnp.dot(wc1_ref[...], p, preferred_element_type=jnp.float32), 0.0)   # (Mp,1)
        a2 = jax.nn.sigmoid(
            jnp.dot(wc2_ref[...], a1, preferred_element_type=jnp.float32))       # (Cp,1)
        # feat * atten + feat  ==  feat * (atten + 1)
        out_ref[...] = (feat_ref[...] * (a2 + 1.0)).astype(out_ref.dtype)

    out_p = pl.pallas_call(
        scale_kernel,
        out_shape=jax.ShapeDtypeStruct((N, Cp, S_pad), jnp.float32),
        grid=(N, n_s),
        in_specs=[feat_spec, pooled_spec,
                  pl.BlockSpec((Mp, Cp), lambda n, s: (0, 0)),
                  pl.BlockSpec((Cp, Mp), lambda n, s: (0, 0))],
        out_specs=feat_spec,
        compiler_params=pltpu.CompilerParams(
            dimension_semantics=("parallel", "parallel"),
            vmem_limit_bytes=_VMEM_LIMIT),
    )(feat, pooled, wc1_k, wc2_k)

    # strip channel / spatial padding; (N, Cout, S) -> NCHW via pure reshape
    return out_p[:, :Cout, :S].reshape(N, Cout, H, W)


def init_params(key, in_chan, out_chan):
    """Deterministic parameter init (shapes from FeatureFusionModule.__init__).

    Weights stored PyTorch-style (out_channels, in_channels) for the 1x1 convs.
    """
    k1, k2, k3 = jax.random.split(key, 3)
    mid = out_chan // 4
    # convblk.conv: kaiming_normal_(a=1) -> std = 1/sqrt(fan_in), fan_in = in_chan (1x1)
    w1 = jax.random.normal(k1, (out_chan, in_chan), jnp.float32) / jnp.sqrt(in_chan)
    c1 = in_chan // 2                       # torch.cat([fsp, fcp], dim=1) ordering
    w1a, w1b = w1[:, :c1], w1[:, c1:]
    gamma = jnp.ones((out_chan,), jnp.float32)      # BatchNorm2d defaults
    beta = jnp.zeros((out_chan,), jnp.float32)
    wc1 = jax.random.normal(k2, (mid, out_chan), jnp.float32) / jnp.sqrt(out_chan)
    wc2 = jax.random.normal(k3, (out_chan, mid), jnp.float32) / jnp.sqrt(mid)
    return (w1a, w1b, gamma, beta, wc1, wc2)


def reference_forward(fsp_nchw, fcp_nchw, params):
    """Plain-JAX reference for numerical verification (BN in training mode)."""
    w1a, w1b, gamma, beta, wc1, wc2 = params
    N, C1, H, W = fsp_nchw.shape
    S = H * W
    x1 = fsp_nchw.reshape(N, C1, S)
    x2 = fcp_nchw.reshape(N, fcp_nchw.shape[1], S)
    pre = (jnp.einsum('oc,ncs->nos', w1a, x1)
           + jnp.einsum('oc,ncs->nos', w1b, x2))
    mean = jnp.mean(pre, axis=(0, 2), keepdims=True)
    var = jnp.mean((pre - mean) ** 2, axis=(0, 2), keepdims=True)
    g = gamma.reshape(1, -1, 1)
    b = beta.reshape(1, -1, 1)
    feat = jnp.maximum((pre - mean) * jax.lax.rsqrt(var + 1e-5) * g + b, 0.0)
    pooled = jnp.mean(feat, axis=2, keepdims=True)                       # (N,Cout,1)
    a1 = jnp.maximum(jnp.einsum('mc,ncx->nmx', wc1, pooled), 0.0)        # (N,mid,1)
    a2 = jax.nn.sigmoid(jnp.einsum('cm,nmx->ncx', wc2, a1))              # (N,Cout,1)
    out = feat * a2 + feat
    return out.reshape(N, -1, H, W)


if __name__ == "__main__":
    key = jax.random.PRNGKey(0)
    k_fsp, k_fcp, k_param = jax.random.split(key, 3)

    N, C_half, H, W = 2, 4, 16, 16          # fsp and fcp each have 4 channels
    in_chan = 2 * C_half                     # concat -> 8
    out_chan = 8                             # out_chan // 4 == 2

    fsp = jax.random.normal(k_fsp, (N, C_half, H, W), jnp.float32)
    fcp = jax.random.normal(k_fcp, (N, C_half, H, W), jnp.float32)
    params = init_params(k_param, in_chan, out_chan)

    out = feature_fusion_forward(fsp, fcp, params)
    out = jax.block_until_ready(out)

    ref = reference_forward(fsp, fcp, params)
    assert out.shape == (N, out_chan, H, W)
    assert jnp.allclose(out, ref, atol=1e-4, rtol=1e-4), "mismatch vs reference"

    print("KERNEL_OK")
</pallas_src>

<mosaic_0001>
module attributes {stable_mosaic.version = 11 : i64} {
  func.func @stats_kernel(%arg0: i32, %arg1: i32, %arg2: memref<1x8x256xf32, #tpu.memory_space<vmem>>, %arg3: memref<1x8x256xf32, #tpu.memory_space<vmem>>, %arg4: memref<8x8xf32, #tpu.memory_space<vmem>>, %arg5: memref<8x8xf32, #tpu.memory_space<vmem>>, %arg6: memref<8x2xf32, #tpu.memory_space<vmem>>) attributes {dimension_semantics = [#tpu.dimension_semantics<arbitrary>, #tpu.dimension_semantics<arbitrary>], iteration_bounds = array<i64: 2, 1>, scalar_prefetch = 0 : i64, scratch_operands = 0 : i64, tpu.core_type = #tpu.core_type<tc>, window_params = [{transform_indices = @transform_0, window_bounds = array<i64: 1, 8, 256>}, {transform_indices = @transform_1, window_bounds = array<i64: 1, 8, 256>}, {pipeline_mode = #tpu.pipeline_mode<synchronous>, transform_indices = @transform_2, window_bounds = array<i64: 8, 8>}, {pipeline_mode = #tpu.pipeline_mode<synchronous>, transform_indices = @transform_3, window_bounds = array<i64: 8, 8>}, {pipeline_mode = #tpu.pipeline_mode<synchronous>, transform_indices = @transform_4, window_bounds = array<i64: 8, 2>}]} {
    %c0_i32 = arith.constant 0 : i32
    %0 = arith.cmpi eq, %arg0, %c0_i32 : i32
    %c0_i32_0 = arith.constant 0 : i32
    %1 = arith.cmpi eq, %arg1, %c0_i32_0 : i32
    %2 = arith.andi %0, %1 : i1
    %3 = arith.extui %2 : i1 to i32
    %c0_i32_1 = arith.constant 0 : i32
    %4 = arith.cmpi ne, %3, %c0_i32_1 : i32
    scf.if %4 {
      %cst_18 = arith.constant 0.000000e+00 : f32
      %23 = vector.broadcast %cst_18 : f32 to vector<8x2xf32>
      %c0_19 = arith.constant 0 : index
      %c0_20 = arith.constant 0 : index
      %24 = vector.load %arg6[%c0_19, %c0_20] : memref<8x2xf32, #tpu.memory_space<vmem>>, vector<8x2xf32>
      tpu.vector_store %arg6[%c0_19, %c0_20], %23 {strides = array<i32>} : memref<8x2xf32, #tpu.memory_space<vmem>>, vector<8x2xf32>,
    } else {
    }
    %c0 = arith.constant 0 : index
    %c0_2 = arith.constant 0 : index
    %5 = vector.load %arg4[%c0, %c0_2] : memref<8x8xf32, #tpu.memory_space<vmem>>, vector<8x8xf32>
    %c0_3 = arith.constant 0 : index
    %c0_4 = arith.constant 0 : index
    %c0_5 = arith.constant 0 : index
    %6 = vector.load %arg2[%c0_3, %c0_4, %c0_5] : memref<1x8x256xf32, #tpu.memory_space<vmem>>, vector<1x8x256xf32>
    %7 = vector.shape_cast %6 : vector<1x8x256xf32> to vector<8x256xf32>
    %cst = arith.constant dense<0.000000e+00> : vector<8x256xf32>
    %8 = tpu.matmul %5, %7, %cst {dimension_numbers = #tpu.dot_dimension_numbers<[1], [0], [0], [1], [0, 0, 1, 1], [], []>} : vector<8x8xf32>, vector<8x256xf32>, vector<8x256xf32> -> vector<8x256xf32>
    %c0_6 = arith.constant 0 : index
    %c0_7 = arith.constant 0 : index
    %9 = vector.load %arg5[%c0_6, %c0_7] : memref<8x8xf32, #tpu.memory_space<vmem>>, vector<8x8xf32>
    %c0_8 = arith.constant 0 : index
    %c0_9 = arith.constant 0 : index
    %c0_10 = arith.constant 0 : index
    %10 = vector.load %arg3[%c0_8, %c0_9, %c0_10] : memref<1x8x256xf32, #tpu.memory_space<vmem>>, vector<1x8x256xf32>
    %11 = vector.shape_cast %10 : vector<1x8x256xf32> to vector<8x256xf32>
    %cst_11 = arith.constant dense<0.000000e+00> : vector<8x256xf32>
    %12 = tpu.matmul %9, %11, %cst_11 {dimension_numbers = #tpu.dot_dimension_numbers<[1], [0], [0], [1], [0, 0, 1, 1], [], []>} : vector<8x8xf32>, vector<8x256xf32>, vector<8x256xf32> -> vector<8x256xf32>
    %13 = arith.addf %8, %12 : vector<8x256xf32>
    %cst_12 = arith.constant dense<0.000000e+00> : vector<8xf32>
    %14 = vector.multi_reduction <add>, %13, %cst_12 [1] : vector<8x256xf32> to vector<8xf32>
    %15 = vector.shape_cast %14 : vector<8xf32> to vector<8x1xf32>
    %16 = arith.mulf %13, %13 : vector<8x256xf32>
    %cst_13 = arith.constant dense<0.000000e+00> : vector<8xf32>
    %17 = vector.multi_reduction <add>, %16, %cst_13 [1] : vector<8x256xf32> to vector<8xf32>
    %18 = vector.shape_cast %17 : vector<8xf32> to vector<8x1xf32>
    %c0_14 = arith.constant 0 : index
    %c0_15 = arith.constant 0 : index
    %19 = vector.load %arg6[%c0_14, %c0_15] : memref<8x2xf32, #tpu.memory_space<vmem>>, vector<8x2xf32>
    %20 = tpu.concatenate %15, %18 in 1 : vector<8x1xf32>, vector<8x1xf32> -> vector<8x2xf32>
    %21 = arith.addf %19, %20 : vector<8x2xf32>
    %c0_16 = arith.constant 0 : index
    %c0_17 = arith.constant 0 : index
    %22 = vector.load %arg6[%c0_16, %c0_17] : memref<8x2xf32, #tpu.memory_space<vmem>>, vector<8x2xf32>
    tpu.vector_store %arg6[%c0_16, %c0_17], %21 {strides = array<i32>} : memref<8x2xf32, #tpu.memory_space<vmem>>, vector<8x2xf32>,
    return
  }
  func.func @transform_0(%arg0: i32, %arg1: i32) -> (i32, i32, i32) {
    %c0_i32 = arith.constant 0 : i32
    %c0_i32_0 = arith.constant 0 : i32
    return %arg0, %c0_i32, %arg1 : i32, i32, i32
  }
  func.func @transform_1(%arg0: i32, %arg1: i32) -> (i32, i32, i32) {
    %c0_i32 = arith.constant 0 : i32
    %c0_i32_0 = arith.constant 0 : i32
    return %arg0, %c0_i32, %arg1 : i32, i32, i32
  }
  func.func @transform_2(%arg0: i32, %arg1: i32) -> (i32, i32) {
    %c0_i32 = arith.constant 0 : i32
    %c0_i32_0 = arith.constant 0 : i32
    %c0_i32_1 = arith.constant 0 : i32
    return %c0_i32, %c0_i32_0 : i32, i32
  }
  func.func @transform_3(%arg0: i32, %arg1: i32) -> (i32, i32) {
    %c0_i32 = arith.constant 0 : i32
    %c0_i32_0 = arith.constant 0 : i32
    %c0_i32_1 = arith.constant 0 : i32
    return %c0_i32, %c0_i32_0 : i32, i32
  }
  func.func @transform_4(%arg0: i32, %arg1: i32) -> (i32, i32) {
    %c0_i32 = arith.constant 0 : i32
    %c0_i32_0 = arith.constant 0 : i32
    %c0_i32_1 = arith.constant 0 : i32
    return %c0_i32, %c0_i32_0 : i32, i32
  }
}

</mosaic_0001>

<llo_original>
// kernel: tpu_custom_call.1
$region0: #{tpu_custom_call.1}
  #allocation0 [shape = 'u32[]', space=smem, size = 0x4, offset = 0x4, fixed_abs, tag = 'smem constant byte address 0x4 - core index']
  #allocation1 [shape = 'u32[144,128]{1,0:T(1,128)}', space=vmem, size = 0x12000, scoped, tag = 'internal scratch']
  %s0 = inlined_call_operand.hbm [shape: f32[2,8,256], index: 0, kind: input, shape index: {}]
  %s1 = inlined_call_operand.hbm [shape: f32[2,8,256], index: 1, kind: input, shape index: {}]
  %s2 = inlined_call_operand.hbm [shape: f32[8,8], index: 2, kind: input, shape index: {}]
  %s3 = inlined_call_operand.hbm [shape: f32[8,8], index: 3, kind: input, shape index: {}]
  %s4 = inlined_call_operand.vmem [shape: f32[8,2], index: 4, kind: output, shape index: {}]
  %s5 = sld [smem:[#allocation0]]
  $region69: #{tpu_custom_call.1} parent=0
    _
  %s7 = ssub.s32 1, %s5
  %s8 = scalar_select 0, %s7, %s5
  $region1: #{tpu_custom_call.1} parent=0
    #allocation2 [shape = 'u8[16384]{0}', space=vmem, size = 0x4000, scoped, tag = 'input window, operand 0']
    #allocation3 [shape = 's32[2]{0}', space=sflag, size = 0x8, scoped, tag = 'scoped memory for tpu_custom_call.1']
    #allocation4 [shape = 'u8[16384]{0}', space=vmem, size = 0x4000, scoped, tag = 'input window, operand 1']
    #allocation5 [shape = 's32[2]{0}', space=sflag, size = 0x8, scoped, tag = 'scoped memory for tpu_custom_call.1']
    #allocation6 [shape = 'u8[4096]{0}', space=vmem, size = 0x1000, scoped, tag = 'input window, operand 2, single buffered']
    #allocation7 [shape = 'u8[4096]{0}', space=vmem, size = 0x1000, scoped, tag = 'input window, operand 3, single buffered']
    #allocation8 [shape = 's32[1]{0}', space=sflag, size = 0x4, scoped, tag = 'scoped memory for tpu_custom_call.1']
    %9 = vsyncpa [#allocation3], 0
    %s10 = scalar_lea.sflag [#allocation3], 1
    %11 = vsyncpa %s10, 0
    %12 = vsyncpa [#allocation5], 0
    %s13 = scalar_lea.sflag [#allocation5], 1
    %14 = vsyncpa %s13, 0
    %15 = vsyncpa [#allocation8], 0
    loop: start=0, step=1, limit=4
    $region2: #{tpu_custom_call.1} parent=1 // loop_pre_header
      _
    $region3: #{tpu_custom_call.1} parent=1 // loop_header
      %s17 = sphi 0, %s21
      %p18 = scmp.ge.s32.totalorder %s17, 4
      %s24 = sphi 0, %s36
      %s25 = sphi 0, %s32
      %s26 = sphi 0, %s24
      %s27 = sphi 0, %s25
      %s28 = sphi 0, %s26
      %s29 = sphi 0, %s27
      %s41 = sphi 0, %s43
      %s44 = sphi 0, %s41
      %s45 = sphi 0, %s44
      %s61 = sphi 0, %s45
      %s69 = sphi 0, %s71
      %s72 = sphi 0, %s69
      %s73 = sphi 0, %s72
      %s89 = sphi 0, %s73
      %s93 = sphi 0, %s93
      %s95 = sphi 0, %s93
      %s96 = sphi 0, %s95
      %s110 = sphi 0, %s96
      %s114 = sphi 0, %s114
      %s116 = sphi 0, %s114
      %s117 = sphi 0, %s116
      %s131 = sphi 0, %s117
      %s135 = sphi 0, %s135
      %s137 = sphi 0, %s135
      %s138 = sphi 0, %s137
      %s152 = sphi 0, %s138
    $region4: #{tpu_custom_call.1} parent=1 // loop_header_branch
      %20 = sbr.rel (%p18) target = $region8
    $region5: #{tpu_custom_call.1} parent=1 // loop_body
      %s22 = ssub.s32 %s17, 1
      %s23 = ssub.s32 %s17, 2
      %s30 = sadd.s32 1, %s25
      %p31 = scmp.ge.s32.totalorder %s30, 1
      %s32 = scalar_select %p31, 0, %s30
      %s33 = sadd.s32 1, %s24
      %s34 = scalar_select %p31, %s33, %s24
      %p35 = scmp.ge.s32.totalorder %s34, 2
      %s36 = scalar_select %p35, 0, %s34
      %s37 = ssub.s32 %s24, %s36
      %s38 = ssub.s32 %s25, %s32
      %s39 = sor.u32 %s37, %s38
      %p40 = scmp.eq.s32.totalorder %s39, 0
      %s42 = sadd.s32 %s41, 1
      %s43 = scalar_select %p40, %s41, %s42
      %p46 = pneg %p40
      %p47 = scmp.eq.s32.totalorder %s17, 1
      %p48 = por %p46, %p47
      %p49 = scmp.ne.s32.totalorder %s41, %s44
      %p50 = scmp.eq.s32.totalorder %s17, 0
      %p51 = por %p49, %p50
      %p52 = scmp.ne.s32.totalorder %s41, %s44
      %p53 = scmp.eq.s32.totalorder %s22, 1
      %p54 = por %p52, %p53
      %p55 = scmp.ne.s32.totalorder %s44, %s45
      %p56 = scmp.eq.s32.totalorder %s22, 0
      %p57 = por %p55, %p56
      %p58 = scmp.ne.s32.totalorder %s44, %s45
      %p59 = scmp.eq.s32.totalorder %s23, 1
      %p60 = por %p58, %p59
      %p62 = scmp.ne.s32.totalorder %s45, %s61
      %p63 = scmp.eq.s32.totalorder %s23, 0
      %p64 = por %p62, %p63
      %s65 = ssub.s32 %s24, %s36
      %s66 = ssub.s32 %s25, %s32
      %s67 = sor.u32 %s65, %s66
      %p68 = scmp.eq.s32.totalorder %s67, 0
      %s70 = sadd.s32 %s69, 1
      %s71 = scalar_select %p68, %s69, %s70
      %p74 = pneg %p68
      %p75 = scmp.eq.s32.totalorder %s17, 1
      %p76 = por %p74, %p75
      %p77 = scmp.ne.s32.totalorder %s69, %s72
      %p78 = scmp.eq.s32.totalorder %s17, 0
      %p79 = por %p77, %p78
      %p80 = scmp.ne.s32.totalorder %s69, %s72
      %p81 = scmp.eq.s32.totalorder %s22, 1
      %p82 = por %p80, %p81
      %p83 = scmp.ne.s32.totalorder %s72, %s73
      %p84 = scmp.eq.s32.totalorder %s22, 0
      %p85 = por %p83, %p84
      %p86 = scmp.ne.s32.totalorder %s72, %s73
      %p87 = scmp.eq.s32.totalorder %s23, 1
      %p88 = por %p86, %p87
      %p90 = scmp.ne.s32.totalorder %s73, %s89
      %p91 = scmp.eq.s32.totalorder %s23, 0
      %p92 = por %p90, %p91
      %s94 = sadd.s32 %s93, 1
      %p97 = scmp.eq.s32.totalorder %s17, 1
      %p98 = scmp.ne.s32.totalorder %s93, %s95
      %p99 = scmp.eq.s32.totalorder %s17, 0
      %p100 = por %p98, %p99
      %p101 = scmp.ne.s32.totalorder %s93, %s95
      %p102 = scmp.eq.s32.totalorder %s22, 1
      %p103 = por %p101, %p102
      %p104 = scmp.ne.s32.totalorder %s95, %s96
      %p105 = scmp.eq.s32.totalorder %s22, 0
      %p106 = por %p104, %p105
      %p107 = scmp.ne.s32.totalorder %s95, %s96
      %p108 = scmp.eq.s32.totalorder %s23, 1
      %p109 = por %p107, %p108
      %p111 = scmp.ne.s32.totalorder %s96, %s110
      %p112 = scmp.eq.s32.totalorder %s23, 0
      %p113 = por %p111, %p112
      %s115 = sadd.s32 %s114, 1
      %p118 = scmp.eq.s32.totalorder %s17, 1
      %p119 = scmp.ne.s32.totalorder %s114, %s116
      %p120 = scmp.eq.s32.totalorder %s17, 0
      %p121 = por %p119, %p120
      %p122 = scmp.ne.s32.totalorder %s114, %s116
      %p123 = scmp.eq.s32.totalorder %s22, 1
      %p124 = por %p122, %p123
      %p125 = scmp.ne.s32.totalorder %s116, %s117
      %p126 = scmp.eq.s32.totalorder %s22, 0
      %p127 = por %p125, %p126
      %p128 = scmp.ne.s32.totalorder %s116, %s117
      %p129 = scmp.eq.s32.totalorder %s23, 1
      %p130 = por %p128, %p129
      %p132 = scmp.ne.s32.totalorder %s117, %s131
      %p133 = scmp.eq.s32.totalorder %s23, 0
      %p134 = por %p132, %p133
      %s136 = sadd.s32 %s135, 1
      %p139 = scmp.eq.s32.totalorder %s17, 1
      %p140 = scmp.ne.s32.totalorder %s135, %s137
      %p141 = scmp.eq.s32.totalorder %s17, 0
      %p142 = por %p140, %p141
      %p143 = scmp.ne.s32.totalorder %s135, %s137
      %p144 = scmp.eq.s32.totalorder %s22, 1
      %p145 = por %p143, %p144
      %p146 = scmp.ne.s32.totalorder %s137, %s138
      %p147 = scmp.eq.s32.totalorder %s22, 0
      %p148 = por %p146, %p147
      %p149 = scmp.ne.s32.totalorder %s137, %s138
      %p150 = scmp.eq.s32.totalorder %s23, 1
      %p151 = por %p149, %p150
      %p153 = scmp.ne.s32.totalorder %s138, %s152
      %p154 = scmp.eq.s32.totalorder %s23, 0
      %p155 = por %p153, %p154
      %p156 = scmp.le.s32.totalorder 1, %s17
      %p157 = scmp.lt.s32.totalorder %s17, 3
      %p158 = pnand %p156, %p157
      %p159 = pneg %p158
      // Predicated region
      $region9: #{tpu_custom_call.1} parent=5 // pred_check
        _
      $region10: #{tpu_custom_call.1} parent=5 // pred_check_branch
        %161 = sbr.rel (%p158) target = $region12
      $region11: #{tpu_custom_call.1} parent=5 // pred_region
        %s162 = ssub.s32 %s17, 1
        // Predicated region
        $region13: #{tpu_custom_call.1} parent=11 // pred_check
          %p163 = pneg %p106
        $region14: #{tpu_custom_call.1} parent=11 // pred_check_branch
          %165 = sbr.rel (%p163) target = $region16
        $region15: #{tpu_custom_call.1} parent=11 // pred_region
          %s167 = ssub.s32 128, 128
          %168 = vsyncadd [#allocation5], %s167
          %s170 = sshll.u32 [#allocation6], 4
          %s171 = int_to_ptr.vmem [resolvable:$true] %s170
          %173 = dma.hbm_to_vmem [thread:$0]  %s2, 128, %s171, [#allocation5]
        $region16: #{tpu_custom_call.1} parent=11 // pred_fallthru
          _
        // Predicated region
        $region17: #{tpu_custom_call.1} parent=11 // pred_check
          %p174 = pneg %p127
        $region18: #{tpu_custom_call.1} parent=11 // pred_check_branch
          %176 = sbr.rel (%p174) target = $region20
        $region19: #{tpu_custom_call.1} parent=11 // pred_region
          %s178 = ssub.s32 128, 128
          %179 = vsyncadd [#allocation8], %s178
          %s181 = sshll.u32 [#allocation7], 4
          %s182 = int_to_ptr.vmem [resolvable:$true] %s181
          %184 = dma.hbm_to_vmem [thread:$0]  %s3, 128, %s182, [#allocation8]
        $region20: #{tpu_custom_call.1} parent=11 // pred_fallthru
          _
      $region12: #{tpu_custom_call.1} parent=5 // pred_fallthru
        _
      %p185 = scmp.lt.s32.totalorder %s17, 2
      // Predicated region
      $region21: #{tpu_custom_call.1} parent=5 // pred_check
        %p186 = pneg %p185
      $region22: #{tpu_custom_call.1} parent=5 // pred_check_branch
        %188 = sbr.rel (%p186) target = $region24
      $region23: #{tpu_custom_call.1} parent=5 // pred_region
        // Predicated region
        $region25: #{tpu_custom_call.1} parent=23 // pred_check
          %p189 = pneg %p51
        $region26: #{tpu_custom_call.1} parent=23 // pred_check_branch
          %191 = sbr.rel (%p189) target = $region28
        $region27: #{tpu_custom_call.1} parent=23 // pred_region
          %s192 = sand.u32 %s41, 1
          %s193 = scalar_lea.sflag [#allocation3], %s192
          %s194 = sand.u32 %s41, 1
          %s195 = smul.addr %s194, 16
          %s196 = scalar_lea.vmem [#allocation2], %s195
          %s197 = smul.u32 2, %s25
          %s199 = ssub.s32 256, 256
          %200 = vsyncadd %s193, %s199
          %s201 = smul.addr %s24, 2
          %s202 = sadd.s32 %s197, %s201
          %s203 = smul.addr %s202, 128
          %s204 = scalar_lea.hbm %s0, %s203
          %s206 = sshll.u32 %s196, 4
          %s207 = int_to_ptr.vmem [resolvable:$true] %s206
          %209 = dma.hbm_to_vmem [thread:$0]  %s204, 256, %s207, %s193
        $region28: #{tpu_custom_call.1} parent=23 // pred_fallthru
          _
        // Predicated region
        $region29: #{tpu_custom_call.1} parent=23 // pred_check
          %p210 = pneg %p79
        $region30: #{tpu_custom_call.1} parent=23 // pred_check_branch
          %212 = sbr.rel (%p210) target = $region32
        $region31: #{tpu_custom_call.1} parent=23 // pred_region
          %s213 = sand.u32 %s17, 1
          %s214 = scalar_lea.sflag [#allocation5], %s213
          %s215 = sand.u32 %s69, 1
          %s216 = smul.addr %s215, 16
          %s217 = scalar_lea.vmem [#allocation4], %s216
          %s218 = smul.u32 2, %s25
          %s220 = ssub.s32 256, 256
          %221 = vsyncadd %s214, %s220
          %s222 = smul.addr %s24, 2
          %s223 = sadd.s32 %s218, %s222
          %s224 = smul.addr %s223, 128
          %s225 = scalar_lea.hbm %s1, %s224
          %s227 = sshll.u32 %s217, 4
          %s228 = int_to_ptr.vmem [resolvable:$true] %s227
          %230 = dma.hbm_to_vmem [thread:$0]  %s225, 256, %s228, %s214
        $region32: #{tpu_custom_call.1} parent=23 // pred_fallthru
          _
      $region24: #{tpu_custom_call.1} parent=5 // pred_fallthru
        _
      %p231 = scmp.le.s32.totalorder 1, %s17
      %p232 = scmp.lt.s32.totalorder %s17, 3
      %p233 = pnand %p231, %p232
      %p234 = pneg %p233
      // Predicated region
      $region33: #{tpu_custom_call.1} parent=5 // pred_check
        _
      $region34: #{tpu_custom_call.1} parent=5 // pred_check_branch
        %236 = sbr.rel (%p233) target = $region36
      $region35: #{tpu_custom_call.1} parent=5 // pred_region
        %s237 = ssub.s32 %s17, 1
        %s238 = sand.u32 %s44, 1
        %s239 = scalar_lea.sflag [#allocation3], %s238
        %s240 = sand.u32 %s44, 1
        %s241 = smul.addr %s240, 16
        %s242 = scalar_lea.vmem [#allocation2], %s241
        // Predicated region
        $region37: #{tpu_custom_call.1} parent=35 // pred_check
          %p243 = pneg %p57
        $region38: #{tpu_custom_call.1} parent=35 // pred_check_branch
          %245 = sbr.rel (%p243) target = $region40
        $region39: #{tpu_custom_call.1} parent=35 // pred_region
          %246 = dma.done %s239, 256
        $region40: #{tpu_custom_call.1} parent=35 // pred_fallthru
          _
        %s247 = sand.u32 %s22, 1
        %s248 = scalar_lea.sflag [#allocation5], %s247
        %s249 = sand.u32 %s72, 1
        %s250 = smul.addr %s249, 16
        %s251 = scalar_lea.vmem [#allocation4], %s250
        // Predicated region
        $region41: #{tpu_custom_call.1} parent=35 // pred_check
          %p252 = pneg %p85
        $region42: #{tpu_custom_call.1} parent=35 // pred_check_branch
          %254 = sbr.rel (%p252) target = $region44
        $region43: #{tpu_custom_call.1} parent=35 // pred_region
          %255 = dma.done %s248, 256
        $region44: #{tpu_custom_call.1} parent=35 // pred_fallthru
          _
        // Predicated region
        $region45: #{tpu_custom_call.1} parent=35 // pred_check
          %p256 = pneg %p106
        $region46: #{tpu_custom_call.1} parent=35 // pred_check_branch
          %258 = sbr.rel (%p256) target = $region48
        $region47: #{tpu_custom_call.1} parent=35 // pred_region
          %259 = dma.done [#allocation5], 128
        $region48: #{tpu_custom_call.1} parent=35 // pred_fallthru
          _
        // Predicated region
        $region49: #{tpu_custom_call.1} parent=35 // pred_check
          %p260 = pneg %p127
        $region50: #{tpu_custom_call.1} parent=35 // pred_check_branch
          %262 = sbr.rel (%p260) target = $region52
        $region51: #{tpu_custom_call.1} parent=35 // pred_region
          %263 = dma.done [#allocation8], 128
        $region52: #{tpu_custom_call.1} parent=35 // pred_fallthru
          _
        %s264 = sand.u32 %s44, 1
        %s265 = scalar_lea.sflag [#allocation3], %s264
        %s266 = sand.u32 %s44, 1
        %s267 = smul.addr %s266, 16
        %s268 = scalar_lea.vmem [#allocation2], %s267
        %p269 = pneg %p57
        %p270 = pneg %p54
        %s271 = sand.u32 %s22, 1
        %s272 = scalar_lea.sflag [#allocation5], %s271
        %s273 = sand.u32 %s72, 1
        %s274 = smul.addr %s273, 16
        %s275 = scalar_lea.vmem [#allocation4], %s274
        %p276 = pneg %p85
        %p277 = pneg %p82
        %p278 = pneg %p106
        %p279 = pneg %p103
        %p280 = pneg %p127
        %p281 = pneg %p124
        %p282 = pneg %p148
        %p283 = pneg %p145
        %s284 = smul.u32 2, %s27
        %s285 = smul.u32 2, %s27
        %p286 = scmp.eq.s32.totalorder %s26, 0
        %p287 = scmp.eq.s32.totalorder %s27, 0
        %p288 = pnand %p286, %p287
        %p289 = pneg %p288
        // Predicated region
        $region53: #{tpu_custom_call.1} parent=35 // pred_check
          _
        $region54: #{tpu_custom_call.1} parent=35 // pred_check_branch
          %291 = sbr.rel (%p288) target = $region56
        $region55: #{tpu_custom_call.1} parent=35 // pred_region
          %vm292 = vcmask 15360
          %293 = vst.msk [vmem:[%s4] sm:$0xff] %vm292, 0.0
        $region56: #{tpu_custom_call.1} parent=35 // pred_fallthru
          _
        %v294 = vld [vmem:[#allocation6] sm:$0xff]
        %v295 = vld [vmem:[%s242] sm:$0xff]
        %v296 = vld [vmem:[%s242 + $0x8] sm:$0xff]
        %v297 = vld [vmem:[#allocation7] sm:$0xff]
        %v298 = vld [vmem:[%s251] sm:$0xff]
        %v299 = vld [vmem:[%s251 + $0x8] sm:$0xff]
        %vm300 = vcmask 64512
        %v302 = vsel %vm300, %v297, 0
        %304 = vmatprep.subr.mxu0 0.0
        %305 = vmatpush1.msra.mxu0 0.0
        %306 = vmatprep.subr.mxu0 0.0
        %307 = vmatpush1.msra.mxu0 0.0
        %308 = vmatprep.subr.mxu0 0.0
        %309 = vmatpush1.msra.mxu0 0.0
        %310 = vmatprep.subr.mxu0 0.0
        %311 = vmatpush1.msra.mxu0 0.0
        %312 = vmatprep.subr.mxu0 0.0
        %313 = vmatpush1.msra.mxu0 0.0
        %314 = vmatprep.subr.mxu0 0.0
        %315 = vmatpush1.msra.mxu0 0.0
        %316 = vmatprep.subr.mxu0 0.0
        %317 = vmatpush1.msra.mxu0 0.0
        %318 = vmatprep.subr.mxu0 0.0
        %319 = vmatpush1.msra.mxu0 0.0
        %320 = vmatprep.subr.mxu0 0.0
        %321 = vmatpush1.msra.mxu0 0.0
        %322 = vmatprep.subr.mxu0 0.0
        %323 = vmatpush1.msra.mxu0 0.0
        %324 = vmatprep.subr.mxu0 0.0
        %325 = vmatpush1.msra.mxu0 0.0
        %326 = vmatprep.subr.mxu0 0.0
        %327 = vmatpush1.msra.mxu0 0.0
        %328 = vmatprep.subr.mxu0 0.0
        %329 = vmatpush1.msra.mxu0 0.0
        %330 = vmatprep.subr.mxu0 0.0
        %331 = vmatpush1.msra.mxu0 0.0
        %332 = vmatprep.subr.mxu0 0.0
        %333 = vmatpush1.msra.mxu0 0.0
        %334 = vmatprep.subr.mxu0 %v299
        %335 = vmatpush1.msra.mxu0 %v298
        %336 = vmatprep.subr.mxu0 0.0
        %337 = vmatpush2.msra.mxu0 0.0
        %338 = vmatprep.subr.mxu0 0.0
        %339 = vmatpush2.msra.mxu0 0.0
        %340 = vmatprep.subr.mxu0 0.0
        %341 = vmatpush2.msra.mxu0 0.0
        %342 = vmatprep.subr.mxu0 0.0
        %343 = vmatpush2.msra.mxu0 0.0
        %344 = vmatprep.subr.mxu0 0.0
        %345 = vmatpush2.msra.mxu0 0.0
        %346 = vmatprep.subr.mxu0 0.0
        %347 = vmatpush2.msra.mxu0 0.0
        %348 = vmatprep.subr.mxu0 0.0
        %349 = vmatpush2.msra.mxu0 0.0
        %350 = vmatprep.subr.mxu0 0.0
        %351 = vmatpush2.msra.mxu0 0.0
        %352 = vmatprep.subr.mxu0 0.0
        %353 = vmatpush2.msra.mxu0 0.0
        %354 = vmatprep.subr.mxu0 0.0
        %355 = vmatpush2.msra.mxu0 0.0
        %356 = vmatprep.subr.mxu0 0.0
        %357 = vmatpush2.msra.mxu0 0.0
        %358 = vmatprep.subr.mxu0 0.0
        %359 = vmatpush2.msra.mxu0 0.0
        %360 = vmatprep.subr.mxu0 0.0
        %361 = vmatpush2.msra.mxu0 0.0
        %362 = vmatprep.subr.mxu0 0.0
        %363 = vmatpush2.msra.mxu0 0.0
        %364 = vmatprep.subr.mxu0 0.0
        %365 = vmatpush2.msra.mxu0 0.0
        %366 = vmatprep.subr.mxu0 0.0
        %367 = vmatpush2.msra.mxu0 0.0
        %368 = vmatprep.mubr.f32.mxu0 0.0
        %369 = vmatmul.mubr.f32.gmra.mxu0 %v302
        %v370 = vpop.f32.mrf.mxu0
        %v371 = vadd.f32 0.0, %v370
        %v372 = vpop.f32.mrf.mxu0
        %v373 = vadd.f32 0.0, %v372
        %374 = vdwg.mxu0
        %v376 = vsel %vm300, %v294, 0
        %378 = vmatprep.subr.mxu0 0.0
        %379 = vmatpush1.msra.mxu0 0.0
        %380 = vmatprep.subr.mxu0 0.0
        %381 = vmatpush1.msra.mxu0 0.0
        %382 = vmatprep.subr.mxu0 0.0
        %383 = vmatpush1.msra.mxu0 0.0
        %384 = vmatprep.subr.mxu0 0.0
        %385 = vmatpush1.msra.mxu0 0.0
        %386 = vmatprep.subr.mxu0 0.0
        %387 = vmatpush1.msra.mxu0 0.0
        %388 = vmatprep.subr.mxu0 0.0
        %389 = vmatpush1.msra.mxu0 0.0
        %390 = vmatprep.subr.mxu0 0.0
        %391 = vmatpush1.msra.mxu0 0.0
        %392 = vmatprep.subr.mxu0 0.0
        %393 = vmatpush1.msra.mxu0 0.0
        %394 = vmatprep.subr.mxu0 0.0
        %395 = vmatpush1.msra.mxu0 0.0
        %396 = vmatprep.subr.mxu0 0.0
        %397 = vmatpush1.msra.mxu0 0.0
        %398 = vmatprep.subr.mxu0 0.0
        %399 = vmatpush1.msra.mxu0 0.0
        %400 = vmatprep.subr.mxu0 0.0
        %401 = vmatpush1.msra.mxu0 0.0
        %402 = vmatprep.subr.mxu0 0.0
        %403 = vmatpush1.msra.mxu0 0.0
        %404 = vmatprep.subr.mxu0 0.0
        %405 = vmatpush1.msra.mxu0 0.0
        %406 = vmatprep.subr.mxu0 0.0
        %407 = vmatpush1.msra.mxu0 0.0
        %408 = vmatprep.subr.mxu0 %v296
        %409 = vmatpush1.msra.mxu0 %v295
        %410 = vmatprep.subr.mxu0 0.0
        %411 = vmatpush2.msra.mxu0 0.0
        %412 = vmatprep.subr.mxu0 0.0
        %413 = vmatpush2.msra.mxu0 0.0
        %414 = vmatprep.subr.mxu0 0.0
        %415 = vmatpush2.msra.mxu0 0.0
        %416 = vmatprep.subr.mxu0 0.0
        %417 = vmatpush2.msra.mxu0 0.0
        %418 = vmatprep.subr.mxu0 0.0
        %419 = vmatpush2.msra.mxu0 0.0
        %420 = vmatprep.subr.mxu0 0.0
        %421 = vmatpush2.msra.mxu0 0.0
        %422 = vmatprep.subr.mxu0 0.0
        %423 = vmatpush2.msra.mxu0 0.0
        %424 = vmatprep.subr.mxu0 0.0
        %425 = vmatpush2.msra.mxu0 0.0
        %426 = vmatprep.subr.mxu0 0.0
        %427 = vmatpush2.msra.mxu0 0.0
        %428 = vmatprep.subr.mxu0 0.0
        %429 = vmatpush2.msra.mxu0 0.0
        %430 = vmatprep.subr.mxu0 0.0
        %431 = vmatpush2.msra.mxu0 0.0
        %432 = vmatprep.subr.mxu0 0.0
        %433 = vmatpush2.msra.mxu0 0.0
        %434 = vmatprep.subr.mxu0 0.0
        %435 = vmatpush2.msra.mxu0 0.0
        %436 = vmatprep.subr.mxu0 0.0
        %437 = vmatpush2.msra.mxu0 0.0
        %438 = vmatprep.subr.mxu0 0.0
        %439 = vmatpush2.msra.mxu0 0.0
        %440 = vmatprep.subr.mxu0 0.0
        %441 = vmatpush2.msra.mxu0 0.0
        %442 = vmatprep.mubr.f32.mxu0 0.0
        %443 = vmatmul.mubr.f32.gmra.mxu0 %v376
        %v444 = vpop.f32.mrf.mxu0
        %v445 = vadd.f32 %v371, %v444
        %v446 = vpop.f32.mrf.mxu0
        %v447 = vadd.f32 %v373, %v446
        %448 = vdwg.mxu0
        %v449 = vadd.f32 %v445, %v447
        %450 = vadd.xlane.f32.xlu0 %v449
        %v451 = vpop.xlane.xlu0 %450
        %v452 = vmul.f32 %v445, %v445
        %v453 = vmul.f32 %v447, %v447
        %v454 = vadd.f32 %v452, %v453
        %455 = vadd.xlane.f32.xlu0 %v454
        %v456 = vpop.xlane.xlu0 %455
        %v457 = vld [vmem:[%s4] sm:$0xff]
        %vm458 = vcmask 7168
        %v459 = vsel %vm458, %v451, %v456
        %v460 = vadd.f32 %v457, %v459
        %vm461 = vcmask 15360
        %462 = vst.msk [vmem:[%s4] sm:$0xff] %vm461, %v460
        // Predicated region
        $region57: #{tpu_custom_call.1} parent=35 // pred_check
          %p463 = pneg %p145
        $region58: #{tpu_custom_call.1} parent=35 // pred_check_branch
          %465 = sbr.rel (%p463) target = $region60
        $region59: #{tpu_custom_call.1} parent=35 // pred_region
          _
        $region60: #{tpu_custom_call.1} parent=35 // pred_fallthru
          _
        // Predicated region
        $region61: #{tpu_custom_call.1} parent=35 // pred_check
          %p466 = pneg %p145
        $region62: #{tpu_custom_call.1} parent=35 // pred_check_branch
          %468 = sbr.rel (%p466) target = $region64
        $region63: #{tpu_custom_call.1} parent=35 // pred_region
          _
        $region64: #{tpu_custom_call.1} parent=35 // pred_fallthru
          _
      $region36: #{tpu_custom_call.1} parent=5 // pred_fallthru
        _
      %p469 = scmp.le.s32.totalorder 2, %s17
      // Predicated region
      $region65: #{tpu_custom_call.1} parent=5 // pred_check
        %p470 = pneg %p469
      $region66: #{tpu_custom_call.1} parent=5 // pred_check_branch
        %472 = sbr.rel (%p470) target = $region68
      $region67: #{tpu_custom_call.1} parent=5 // pred_region
        %s473 = ssub.s32 %s17, 2
      $region68: #{tpu_custom_call.1} parent=5 // pred_fallthru
        _
    $region6: #{tpu_custom_call.1} parent=1 // loop_footer
      %s21 = sadd.s32 1, %s17
    $region7: #{tpu_custom_call.1} parent=1 // loop_footer_branch
      %16 = sbr.rel target = $region3
    $region8: #{tpu_custom_call.1} parent=1 // loop_exit
      _
    %474 = vsyncpa [#allocation3], 1
    %s475 = scalar_lea.sflag [#allocation3], 1
    %476 = vsyncpa %s475, 1
    %477 = vsyncpa [#allocation5], 1
    %s478 = scalar_lea.sflag [#allocation5], 1
    %479 = vsyncpa %s478, 1
    %480 = vsyncpa [#allocation8], 1

</llo_original>
